<compile_context>
chip_gen: v6e
topology: v6e:2x2x1
jax: 0.10.0
libtpu: 0.0.40
codegen_flags: <defaults>
</compile_context>

<pallas_src>
import functools

import jax
import jax.numpy as jnp
from jax.experimental import pallas as pl
from jax.experimental.pallas import tpu as pltpu

# ----------------------------- configuration -----------------------------
B = 4            # batch
S = 8            # number of tokens (sequence)
T = 16           # dim_token
H = 32           # pi._dim_hidden (= dim_embd default 32)
A = 4            # dim_action
PAD = 128        # lane width everything is padded to (keeps all stores lane-dense)
WEIGHT_SCALE = 0.2

# Row offsets inside the packed weight slab (all multiples of 8 -> sublane aligned).
_OFF_IN = 0              # (T,   PAD)  input_layer_pi
_OFF_P = T               # (PAD, PAD)  pi Linear (mean-pool 1/S folded in)
_OFF_H1 = T + PAD        # (PAD, PAD)  [wa1 | wv1 | 0]
_OFF_H2 = T + 2 * PAD    # (PAD, PAD)  block-diag [wa2 ; wv2]
_W_ROWS = T + 3 * PAD    # 400 rows

_TILE_B = 128            # batch rows per grid step when the parallel grid is enabled
_MIN_GRID_B = 2 * _TILE_B  # both v7x TensorCores must get >= one full 128-row tile


def _gelu(x):
    # tanh-approximate GELU -> lowered to the EUP slot (free vs. the VPU erf chain).
    # TODO(synk): torch.nn.functional.gelu defaults to the exact erf form; the
    # tanh approximation deviates by ~1e-3 relative (accepted per perf review).
    return jax.nn.gelu(x, approximate=True)


# ------------------------------- kernel ----------------------------------
def actor_critic_kernel(tok_ref, w_ref, b_ref, out_ref, *, batch, seq):
    # Tokens arrive f32; cast once to bf16 so every matmul hits the native
    # bf16 MXU path.  All accumulation / vector math stays f32.
    x = tok_ref[...].astype(jnp.bfloat16)                    # (batch*seq, T)

    # Static, sublane-aligned bf16 views into the packed weight slab (free).
    w_in = w_ref[_OFF_IN:_OFF_IN + T, :]                     # (T,   PAD)
    w_p = w_ref[_OFF_P:_OFF_P + PAD, :]                      # (PAD, PAD) 1/S folded in
    w_h1 = w_ref[_OFF_H1:_OFF_H1 + PAD, :]                   # (PAD, PAD) [wa1|wv1|0]
    w_h2 = w_ref[_OFF_H2:_OFF_H2 + PAD, :]                   # (PAD, PAD) blockdiag[wa2;wv2]

    # Biases cast to f32 immediately; GELU / adds run in f32 (v5e-safe).
    b_in = b_ref[0:1, :].astype(jnp.float32)
    b_p = b_ref[1:2, :].astype(jnp.float32)
    b_h1 = b_ref[2:3, :].astype(jnp.float32)
    b_h2 = b_ref[3:4, :].astype(jnp.float32)

    # input_layer_pi + gelu  (EmbeddingConcatLayer is identity here)
    h = _gelu(jnp.dot(x, w_in, preferred_element_type=jnp.float32) + b_in)  # (batch*seq, PAD) f32

    # pi network: mean-pool over tokens (1/S folded into w_p) -> Linear -> gelu.
    if seq == 1:
        pooled = h                                            # 2-D token input case
    else:
        # seq is a multiple of 8 in the fast path -> free re-tiling + sublane
        # reduction on the XLU slot.
        pooled = jnp.sum(h.reshape(batch, seq, PAD), axis=1)  # (batch, PAD)
    e = _gelu(jnp.dot(pooled.astype(jnp.bfloat16), w_p,
                      preferred_element_type=jnp.float32) + b_p)            # (batch, PAD)

    # Fused action + value heads: one hidden matmul, one lane-dense output write.
    h1 = _gelu(jnp.dot(e.astype(jnp.bfloat16), w_h1,
                       preferred_element_type=jnp.float32) + b_h1)          # [act_hid|val_hid|0]
    out_ref[...] = jnp.dot(h1.astype(jnp.bfloat16), w_h2,
                           preferred_element_type=jnp.float32) + b_h2


# ------------------------------ parameters --------------------------------
def make_params(key):
    ks = jax.random.split(key, 6)
    n = lambda k, shape: (WEIGHT_SCALE * jax.random.normal(k, shape)).astype(jnp.float32)
    z = lambda shape: jnp.zeros(shape, jnp.float32)
    # Weights stored (in, out); biases zero per the module's seeded `initialize`.
    return dict(
        w_in=n(ks[0], (T, H)), b_in=z((H,)),
        w_p=n(ks[1], (H, H)), b_p=z((H,)),
        wa1=n(ks[2], (H, H)), ba1=z((H,)),
        wa2=n(ks[3], (H, A)), ba2=z((A,)),
        wv1=n(ks[4], (H, H)), bv1=z((H,)),
        wv2=n(ks[5], (H, 1)), bv2=z((1,)),
    )


def pack_params(params):
    """Pack all linear layers into one bf16 (400,128) weight slab + bf16 (8,128) bias tile."""
    w = jnp.zeros((_W_ROWS, PAD), jnp.float32)
    w = w.at[_OFF_IN:_OFF_IN + T, 0:H].set(params["w_in"])
    w = w.at[_OFF_P:_OFF_P + H, 0:H].set(params["w_p"] / S)            # fold mean-pool 1/S
    w = w.at[_OFF_H1:_OFF_H1 + H, 0:H].set(params["wa1"])
    w = w.at[_OFF_H1:_OFF_H1 + H, H:2 * H].set(params["wv1"])
    w = w.at[_OFF_H2:_OFF_H2 + H, 0:A].set(params["wa2"])
    w = w.at[_OFF_H2 + H:_OFF_H2 + 2 * H, A:A + 1].set(params["wv2"])

    b = jnp.zeros((8, PAD), jnp.float32)
    b = b.at[0, 0:H].set(params["b_in"])
    b = b.at[1, 0:H].set(params["b_p"])
    b = b.at[2, 0:H].set(params["ba1"])
    b = b.at[2, H:2 * H].set(params["bv1"])
    b = b.at[3, 0:A].set(params["ba2"])
    b = b.at[3, A:A + 1].set(params["bv2"])
    # bf16 slabs: half the HBM traffic, native MXU operand dtype.
    return w.astype(jnp.bfloat16), b.astype(jnp.bfloat16)


def check_packing_invariants(w_slab, b_slab):
    """The `logits = out[:, :A]`, `value = out[:, A]` slicing relies on these zeros."""
    w = jax.device_get(w_slab).astype(jnp.float32)
    b = jax.device_get(b_slab).astype(jnp.float32)
    assert (w[_OFF_H1:_OFF_H1 + PAD, 2 * H:] == 0).all()            # h1 pad lanes stay 0
    assert (w[_OFF_H2 + 2 * H:_OFF_H2 + PAD, :] == 0).all()         # pad rows of head-2
    assert (w[_OFF_H2:_OFF_H2 + H, A] == 0).all()                   # wa2 doesn't bleed into value lane
    assert (w[_OFF_H2 + H:_OFF_H2 + 2 * H, :A] == 0).all()          # wv2 doesn't bleed into logit lanes
    assert (b[2, 2 * H:] == 0).all() and (b[3, A + 1:] == 0).all()  # bias padding zero


# ------------------------------ wrapper -----------------------------------
def token_actor_critic_forward(tokens, w_slab, b_slab):
    """Returns (action_logits [B, A], value [B]).  forward() returns the logits;
    the value is what the module stores in self.value.

    Perf note: this kernel is latency / call-overhead bound at tiny B; callers
    should stack many env steps / micro-batches along the batch dim into one
    invocation.  Once B >= 256 the wrapper switches to a parallel grid so both
    v7x TensorCores get full 128-row tiles.
    """
    if tokens.ndim == 2:                       # matches `tokens.unsqueeze(1)`
        tokens = tokens[:, None, :]
    b, s, t = tokens.shape
    # Perf guard (not correctness): keep the in-kernel (B*S,PAD)->(B,S,PAD)
    # re-tiling free — S=1 or S a multiple of 8 are the fast paths.

    use_grid = b >= _MIN_GRID_B
    row_align = _TILE_B if use_grid else 8     # >=8 rows -> full unmasked output store
    b_pad = pl.cdiv(b, row_align) * row_align
    if b_pad != b:
        tokens = jnp.pad(tokens, ((0, b_pad - b), (0, 0), (0, 0)))
    x2d = tokens.reshape(b_pad * s, t)         # layout plumbing stays in the wrapper

    flops = 2 * (b_pad * s * t * PAD) + 3 * 2 * (b_pad * PAD * PAD)
    transcendentals = b_pad * s * PAD + 2 * b_pad * PAD
    bytes_accessed = (x2d.size * x2d.dtype.itemsize
                      + w_slab.size * w_slab.dtype.itemsize
                      + b_slab.size * b_slab.dtype.itemsize
                      + b_pad * PAD * 4)
    cost = pl.CostEstimate(flops=flops, transcendentals=transcendentals,
                           bytes_accessed=bytes_accessed)

    if use_grid:
        kern = functools.partial(actor_critic_kernel, batch=_TILE_B, seq=s)
        out = pl.pallas_call(
            kern,
            out_shape=jax.ShapeDtypeStruct((b_pad, PAD), jnp.float32),
            grid=(b_pad // _TILE_B,),
            in_specs=[
                pl.BlockSpec((_TILE_B * s, t), lambda i: (i, 0)),
                # Constant index_maps: packed slabs stay VMEM-resident across
                # grid steps instead of being re-DMA'd each step.
                pl.BlockSpec((_W_ROWS, PAD), lambda i: (0, 0)),
                pl.BlockSpec((8, PAD), lambda i: (0, 0)),
            ],
            out_specs=pl.BlockSpec((_TILE_B, PAD), lambda i: (i, 0)),
            compiler_params=pltpu.CompilerParams(
                dimension_semantics=("parallel",)),
            cost_estimate=cost,
        )(x2d, w_slab, b_slab)
    else:
        # Tiny batch: a grid would be a serial loop with ~0.35 us/step overhead.
        vmem = pl.BlockSpec(memory_space=pltpu.MemorySpace.VMEM)
        kern = functools.partial(actor_critic_kernel, batch=b_pad, seq=s)
        out = pl.pallas_call(
            kern,
            out_shape=jax.ShapeDtypeStruct((b_pad, PAD), jnp.float32),
            in_specs=[vmem, vmem, vmem],
            out_specs=vmem,
            cost_estimate=cost,
        )(x2d, w_slab, b_slab)

    logits = out[:b, :A]
    value = out[:b, A]
    return logits, value


# ------------------------- pure-JAX reference ------------------------------
def reference_forward(tokens, params):
    if tokens.ndim == 2:
        tokens = tokens[:, None, :]
    g = lambda x: jax.nn.gelu(x, approximate=True)
    h = g(tokens @ params["w_in"] + params["b_in"])          # (B,S,H)
    pooled = jnp.mean(h, axis=1)                             # (B,H)
    e = g(pooled @ params["w_p"] + params["b_p"])            # (B,H)
    a = g(e @ params["wa1"] + params["ba1"])
    logits = a @ params["wa2"] + params["ba2"]
    v = g(e @ params["wv1"] + params["bv1"])
    value = (v @ params["wv2"] + params["bv2"]).reshape(-1)
    return logits, value


if __name__ == "__main__":
    key = jax.random.PRNGKey(0)
    k_tok, k_par = jax.random.split(key)
    tokens = jax.random.normal(k_tok, (B, S, T), dtype=jnp.float32)
    params = make_params(k_par)
    w_slab, b_slab = pack_params(params)
    check_packing_invariants(w_slab, b_slab)

    fwd = jax.jit(token_actor_critic_forward)
    logits, value = fwd(tokens, w_slab, b_slab)
    jax.block_until_ready((logits, value))

    ref_logits, ref_value = reference_forward(tokens, params)

    assert logits.shape == (B, A)
    assert value.shape == (B,)
    # bf16 matmul operands -> loosened tolerances (per perf review).
    assert jnp.allclose(logits, ref_logits, rtol=2e-2, atol=2e-2), "logits mismatch"
    assert jnp.allclose(value, ref_value, rtol=2e-2, atol=2e-2), "value mismatch"
    print("KERNEL_OK")
</pallas_src>

<mosaic_0001>
module attributes {stable_mosaic.version = 11 : i64} {
  func.func @actor_critic_kernel(%arg0: memref<64x16xf32, #tpu.memory_space<vmem>>, %arg1: memref<400x128xbf16, #tpu.memory_space<vmem>>, %arg2: memref<8x128xbf16, #tpu.memory_space<vmem>>, %arg3: memref<8x128xf32, #tpu.memory_space<vmem>>) attributes {dimension_semantics = [], scalar_prefetch = 0 : i64, scratch_operands = 0 : i64, tpu.core_type = #tpu.core_type<tc>} {
    %c0 = arith.constant 0 : index
    %c0_0 = arith.constant 0 : index
    %0 = vector.load %arg0[%c0, %c0_0] : memref<64x16xf32, #tpu.memory_space<vmem>>, vector<64x16xf32>
    %1 = arith.truncf %0 : vector<64x16xf32> to vector<64x16xbf16>
    %c0_1 = arith.constant 0 : index
    %c0_2 = arith.constant 0 : index
    %2 = vector.load %arg1[%c0_1, %c0_2] : memref<400x128xbf16, #tpu.memory_space<vmem>>, vector<16x128xbf16>
    %c16 = arith.constant 16 : index
    %c0_3 = arith.constant 0 : index
    %3 = vector.load %arg1[%c16, %c0_3] : memref<400x128xbf16, #tpu.memory_space<vmem>>, vector<128x128xbf16>
    %c144 = arith.constant 144 : index
    %c0_4 = arith.constant 0 : index
    %4 = vector.load %arg1[%c144, %c0_4] : memref<400x128xbf16, #tpu.memory_space<vmem>>, vector<128x128xbf16>
    %c272 = arith.constant 272 : index
    %c0_5 = arith.constant 0 : index
    %5 = vector.load %arg1[%c272, %c0_5] : memref<400x128xbf16, #tpu.memory_space<vmem>>, vector<128x128xbf16>
    %c0_6 = arith.constant 0 : index
    %c0_7 = arith.constant 0 : index
    %6 = vector.load %arg2[%c0_6, %c0_7] : memref<8x128xbf16, #tpu.memory_space<vmem>>, vector<1x128xbf16>
    %7 = arith.extf %6 : vector<1x128xbf16> to vector<1x128xf32>
    %c1 = arith.constant 1 : index
    %c0_8 = arith.constant 0 : index
    %8 = vector.load %arg2[%c1, %c0_8] : memref<8x128xbf16, #tpu.memory_space<vmem>>, vector<1x128xbf16>
    %9 = arith.extf %8 : vector<1x128xbf16> to vector<1x128xf32>
    %c2 = arith.constant 2 : index
    %c0_9 = arith.constant 0 : index
    %10 = vector.load %arg2[%c2, %c0_9] : memref<8x128xbf16, #tpu.memory_space<vmem>>, vector<1x128xbf16>
    %11 = arith.extf %10 : vector<1x128xbf16> to vector<1x128xf32>
    %c3 = arith.constant 3 : index
    %c0_10 = arith.constant 0 : index
    %12 = vector.load %arg2[%c3, %c0_10] : memref<8x128xbf16, #tpu.memory_space<vmem>>, vector<1x128xbf16>
    %13 = arith.extf %12 : vector<1x128xbf16> to vector<1x128xf32>
    %cst = arith.constant dense<0.000000e+00> : vector<64x128xf32>
    %14 = tpu.matmul %1, %2, %cst {dimension_numbers = #tpu.dot_dimension_numbers<[1], [0], [0], [1], [0, 0, 1, 1], [], []>} : vector<64x16xbf16>, vector<16x128xbf16>, vector<64x128xf32> -> vector<64x128xf32>
    %15 = vector.broadcast %7 : vector<1x128xf32> to vector<64x128xf32>
    %16 = arith.addf %14, %15 : vector<64x128xf32>
    %17 = arith.mulf %16, %16 : vector<64x128xf32>
    %18 = arith.mulf %16, %17 : vector<64x128xf32>
    %cst_11 = arith.constant 4.471500e-02 : f32
    %19 = vector.broadcast %cst_11 : f32 to vector<64x128xf32>
    %20 = arith.mulf %19, %18 : vector<64x128xf32>
    %21 = arith.addf %16, %20 : vector<64x128xf32>
    %cst_12 = arith.constant 0.797884583 : f32
    %22 = vector.broadcast %cst_12 : f32 to vector<64x128xf32>
    %23 = arith.mulf %22, %21 : vector<64x128xf32>
    %24 = math.tanh %23 : vector<64x128xf32>
    %cst_13 = arith.constant 1.000000e+00 : f32
    %25 = vector.broadcast %cst_13 : f32 to vector<64x128xf32>
    %26 = arith.addf %25, %24 : vector<64x128xf32>
    %cst_14 = arith.constant 5.000000e-01 : f32
    %27 = vector.broadcast %cst_14 : f32 to vector<64x128xf32>
    %28 = arith.mulf %27, %26 : vector<64x128xf32>
    %29 = arith.mulf %16, %28 : vector<64x128xf32>
    %30 = vector.shape_cast %29 : vector<64x128xf32> to vector<8x8x128xf32>
    %cst_15 = arith.constant dense<0.000000e+00> : vector<8x128xf32>
    %31 = vector.multi_reduction <add>, %30, %cst_15 [1] : vector<8x8x128xf32> to vector<8x128xf32>
    %32 = arith.truncf %31 : vector<8x128xf32> to vector<8x128xbf16>
    %cst_16 = arith.constant dense<0.000000e+00> : vector<8x128xf32>
    %33 = tpu.matmul %32, %3, %cst_16 {dimension_numbers = #tpu.dot_dimension_numbers<[1], [0], [0], [1], [0, 0, 1, 1], [], []>} : vector<8x128xbf16>, vector<128x128xbf16>, vector<8x128xf32> -> vector<8x128xf32>
    %34 = vector.broadcast %9 : vector<1x128xf32> to vector<8x128xf32>
    %35 = arith.addf %33, %34 : vector<8x128xf32>
    %36 = arith.mulf %35, %35 : vector<8x128xf32>
    %37 = arith.mulf %35, %36 : vector<8x128xf32>
    %cst_17 = arith.constant 4.471500e-02 : f32
    %38 = vector.broadcast %cst_17 : f32 to vector<8x128xf32>
    %39 = arith.mulf %38, %37 : vector<8x128xf32>
    %40 = arith.addf %35, %39 : vector<8x128xf32>
    %cst_18 = arith.constant 0.797884583 : f32
    %41 = vector.broadcast %cst_18 : f32 to vector<8x128xf32>
    %42 = arith.mulf %41, %40 : vector<8x128xf32>
    %43 = math.tanh %42 : vector<8x128xf32>
    %cst_19 = arith.constant 1.000000e+00 : f32
    %44 = vector.broadcast %cst_19 : f32 to vector<8x128xf32>
    %45 = arith.addf %44, %43 : vector<8x128xf32>
    %cst_20 = arith.constant 5.000000e-01 : f32
    %46 = vector.broadcast %cst_20 : f32 to vector<8x128xf32>
    %47 = arith.mulf %46, %45 : vector<8x128xf32>
    %48 = arith.mulf %35, %47 : vector<8x128xf32>
    %49 = arith.truncf %48 : vector<8x128xf32> to vector<8x128xbf16>
    %cst_21 = arith.constant dense<0.000000e+00> : vector<8x128xf32>
    %50 = tpu.matmul %49, %4, %cst_21 {dimension_numbers = #tpu.dot_dimension_numbers<[1], [0], [0], [1], [0, 0, 1, 1], [], []>} : vector<8x128xbf16>, vector<128x128xbf16>, vector<8x128xf32> -> vector<8x128xf32>
    %51 = vector.broadcast %11 : vector<1x128xf32> to vector<8x128xf32>
    %52 = arith.addf %50, %51 : vector<8x128xf32>
    %53 = arith.mulf %52, %52 : vector<8x128xf32>
    %54 = arith.mulf %52, %53 : vector<8x128xf32>
    %cst_22 = arith.constant 4.471500e-02 : f32
    %55 = vector.broadcast %cst_22 : f32 to vector<8x128xf32>
    %56 = arith.mulf %55, %54 : vector<8x128xf32>
    %57 = arith.addf %52, %56 : vector<8x128xf32>
    %cst_23 = arith.constant 0.797884583 : f32
    %58 = vector.broadcast %cst_23 : f32 to vector<8x128xf32>
    %59 = arith.mulf %58, %57 : vector<8x128xf32>
    %60 = math.tanh %59 : vector<8x128xf32>
    %cst_24 = arith.constant 1.000000e+00 : f32
    %61 = vector.broadcast %cst_24 : f32 to vector<8x128xf32>
    %62 = arith.addf %61, %60 : vector<8x128xf32>
    %cst_25 = arith.constant 5.000000e-01 : f32
    %63 = vector.broadcast %cst_25 : f32 to vector<8x128xf32>
    %64 = arith.mulf %63, %62 : vector<8x128xf32>
    %65 = arith.mulf %52, %64 : vector<8x128xf32>
    %66 = arith.truncf %65 : vector<8x128xf32> to vector<8x128xbf16>
    %cst_26 = arith.constant dense<0.000000e+00> : vector<8x128xf32>
    %67 = tpu.matmul %66, %5, %cst_26 {dimension_numbers = #tpu.dot_dimension_numbers<[1], [0], [0], [1], [0, 0, 1, 1], [], []>} : vector<8x128xbf16>, vector<128x128xbf16>, vector<8x128xf32> -> vector<8x128xf32>
    %68 = vector.broadcast %13 : vector<1x128xf32> to vector<8x128xf32>
    %69 = arith.addf %67, %68 : vector<8x128xf32>
    %c0_27 = arith.constant 0 : index
    %c0_28 = arith.constant 0 : index
    %70 = vector.load %arg3[%c0_27, %c0_28] : memref<8x128xf32, #tpu.memory_space<vmem>>, vector<8x128xf32>
    tpu.vector_store %arg3[%c0_27, %c0_28], %69 {strides = array<i32>} : memref<8x128xf32, #tpu.memory_space<vmem>>, vector<8x128xf32>,
    return
  }
}

</mosaic_0001>

<llo_original>
// kernel: token_actor_critic_forward.1
$region0: #{token_actor_critic_forward.1}
  #allocation0 [shape = 'u32[]', space=smem, size = 0x4, offset = 0x4, fixed_abs, tag = 'smem constant byte address 0x4 - core index']
  #allocation1 [shape = 'u32[144,128]{1,0:T(1,128)}', space=vmem, size = 0x12000, scoped, tag = 'internal scratch']
  %s0 = inlined_call_operand.vmem [shape: f32[64,16], index: 0, kind: input, shape index: {}]
  %s1 = inlined_call_operand.hbm [shape: bf16[400,128], index: 1, kind: input, shape index: {}]
  %s2 = inlined_call_operand.vmem [shape: bf16[8,128], index: 2, kind: input, shape index: {}]
  %s3 = inlined_call_operand.vmem [shape: f32[8,128], index: 3, kind: output, shape index: {}]
  %s4 = sld [smem:[#allocation0]]
  $region26: #{token_actor_critic_forward.1} parent=0
    _
  %s6 = ssub.s32 1, %s4
  %s7 = scalar_select 0, %s6, %s4
  $region1: #{token_actor_critic_forward.1} parent=0
    #allocation2 [shape = 'u8[102400]{0}', space=vmem, size = 0x19000, scoped, tag = 'input window, operand 1, single buffered']
    #allocation3 [shape = 's32[1]{0}', space=sflag, size = 0x4, scoped, tag = 'scoped memory for token_actor_critic_forward.1']
    %8 = vsyncpa [#allocation3], 0
    // Predicated region
    $region2: #{token_actor_critic_forward.1} parent=1 // pred_check
      _
    $region3: #{token_actor_critic_forward.1} parent=1 // pred_check_branch
      %10 = sbr.rel (0) target = $region5
    $region4: #{token_actor_critic_forward.1} parent=1 // pred_region
      _
    $region5: #{token_actor_critic_forward.1} parent=1 // pred_fallthru
      _
    // Predicated region
    $region6: #{token_actor_critic_forward.1} parent=1 // pred_check
      _
    $region7: #{token_actor_critic_forward.1} parent=1 // pred_check_branch
      %12 = sbr.rel (0) target = $region9
    $region8: #{token_actor_critic_forward.1} parent=1 // pred_region
      %s14 = ssub.s32 3200, 3200
      %15 = vsyncadd [#allocation3], %s14
      %s16 = sshll.u32 [#allocation2], 4
      %s17 = int_to_ptr.vmem [resolvable:$true] %s16
      %22 = dma.hbm_to_vmem [thread:$0]  %s1, 3200, %s17, [#allocation3], 64, 64, 4
    $region9: #{token_actor_critic_forward.1} parent=1 // pred_fallthru
      _
    // Predicated region
    $region10: #{token_actor_critic_forward.1} parent=1 // pred_check
      _
    $region11: #{token_actor_critic_forward.1} parent=1 // pred_check_branch
      %24 = sbr.rel (0) target = $region13
    $region12: #{token_actor_critic_forward.1} parent=1 // pred_region
      _
    $region13: #{token_actor_critic_forward.1} parent=1 // pred_fallthru
      _
    // Predicated region
    $region14: #{token_actor_critic_forward.1} parent=1 // pred_check
      _
    $region15: #{token_actor_critic_forward.1} parent=1 // pred_check_branch
      %26 = sbr.rel (0) target = $region17
    $region16: #{token_actor_critic_forward.1} parent=1 // pred_region
      %27 = dma.done [#allocation3], 3200
    $region17: #{token_actor_critic_forward.1} parent=1 // pred_fallthru
      _
    %v29 = vld [vmem:[%s0] sm:$0xff]
    %v30 = vld [vmem:[%s0 + $0x8] sm:$0xff]
    %v31 = vld [vmem:[%s0 + $0x10] sm:$0xff]
    %v32 = vld [vmem:[%s0 + $0x18] sm:$0xff]
    %v33 = vld [vmem:[%s0 + $0x20] sm:$0xff]
    %v34 = vld [vmem:[%s0 + $0x28] sm:$0xff]
    %v35 = vld [vmem:[%s0 + $0x30] sm:$0xff]
    %v36 = vld [vmem:[%s0 + $0x38] sm:$0xff]
    %v37 = vpack.c.bf16 %v30, %v29
    %v38 = vpack.c.bf16 %v32, %v31
    %v39 = vpack.c.bf16 %v34, %v33
    %v40 = vpack.c.bf16 %v36, %v35
    %v41 = vld [vmem:[#allocation2] sm:$0xf]
    %v42 = vld [vmem:[#allocation2 + $0x4] sm:$0xf]
    %v43 = vld [vmem:[#allocation2 + $0x8] sm:$0xf]
    %v44 = vld [vmem:[#allocation2 + $0xc] sm:$0xf]
    %v45 = vld [vmem:[#allocation2 + $0x10] sm:$0xf]
    %v46 = vld [vmem:[#allocation2 + $0x14] sm:$0xf]
    %v47 = vld [vmem:[#allocation2 + $0x18] sm:$0xf]
    %v48 = vld [vmem:[#allocation2 + $0x1c] sm:$0xf]
    %v49 = vld [vmem:[#allocation2 + $0x20] sm:$0xf]
    %v50 = vld [vmem:[#allocation2 + $0x24] sm:$0xf]
    %v51 = vld [vmem:[#allocation2 + $0x28] sm:$0xf]
    %v52 = vld [vmem:[#allocation2 + $0x2c] sm:$0xf]
    %v53 = vld [vmem:[#allocation2 + $0x30] sm:$0xf]
    %v54 = vld [vmem:[#allocation2 + $0x34] sm:$0xf]
    %v55 = vld [vmem:[#allocation2 + $0x38] sm:$0xf]
    %v56 = vld [vmem:[#allocation2 + $0x3c] sm:$0xf]
    %v57 = vld [vmem:[#allocation2 + $0x40] sm:$0xf]
    %v58 = vld [vmem:[#allocation2 + $0x44] sm:$0xf]
    %v59 = vld [vmem:[#allocation2 + $0x48] sm:$0xf]
    %v60 = vld [vmem:[#allocation2 + $0x4c] sm:$0xf]
    %v61 = vld [vmem:[#allocation2 + $0x50] sm:$0xf]
    %v62 = vld [vmem:[#allocation2 + $0x54] sm:$0xf]
    %v63 = vld [vmem:[#allocation2 + $0x58] sm:$0xf]
    %v64 = vld [vmem:[#allocation2 + $0x5c] sm:$0xf]
    %v65 = vld [vmem:[#allocation2 + $0x60] sm:$0xf]
    %v66 = vld [vmem:[#allocation2 + $0x64] sm:$0xf]
    %v67 = vld [vmem:[#allocation2 + $0x68] sm:$0xf]
    %v68 = vld [vmem:[#allocation2 + $0x6c] sm:$0xf]
    %v69 = vld [vmem:[#allocation2 + $0x70] sm:$0xf]
    %v70 = vld [vmem:[#allocation2 + $0x74] sm:$0xf]
    %v71 = vld [vmem:[#allocation2 + $0x78] sm:$0xf]
    %v72 = vld [vmem:[#allocation2 + $0x7c] sm:$0xf]
    %v73 = vld [vmem:[#allocation2 + $0x80] sm:$0xf]
    %v74 = vld [vmem:[#allocation2 + $0x84] sm:$0xf]
    %v75 = vld [vmem:[#allocation2 + $0x88] sm:$0xf]
    %v76 = vld [vmem:[#allocation2 + $0x8c] sm:$0xf]
    %v77 = vld [vmem:[#allocation2 + $0x90] sm:$0xf]
    %v78 = vld [vmem:[#allocation2 + $0x94] sm:$0xf]
    %v79 = vld [vmem:[#allocation2 + $0x98] sm:$0xf]
    %v80 = vld [vmem:[#allocation2 + $0x9c] sm:$0xf]
    %v81 = vld [vmem:[#allocation2 + $0xa0] sm:$0xf]
    %v82 = vld [vmem:[#allocation2 + $0xa4] sm:$0xf]
    %v83 = vld [vmem:[#allocation2 + $0xa8] sm:$0xf]
    %v84 = vld [vmem:[#allocation2 + $0xac] sm:$0xf]
    %v85 = vld [vmem:[#allocation2 + $0xb0] sm:$0xf]
    %v86 = vld [vmem:[#allocation2 + $0xb4] sm:$0xf]
    %v87 = vld [vmem:[#allocation2 + $0xb8] sm:$0xf]
    %v88 = vld [vmem:[#allocation2 + $0xbc] sm:$0xf]
    %v89 = vld [vmem:[#allocation2 + $0xc0] sm:$0xf]
    %v90 = vld [vmem:[#allocation2 + $0xc4] sm:$0xf]
    %v91 = vld [vmem:[%s2] sm:$0x1]
    %v92 = vunpack.c.l.bf16 %v91
    %v93 = vld [vmem:[%s2] sm:$0x2]
    %v94 = vunpack.c.l.bf16 %v93
    %v95 = vlaneseq
    %v96 = vshrl.u32 %v95, 7
    %v97 = vsub.s32 0, %v96
    %v98 = vrot.slane %v92, %v97
    %v101 = vunpack.c.l.b16 %v41
    %v102 = vunpack.c.l.b16 %v42
    %v103 = vpack.c.b16 %v102, %v101
    %vm105 = vcmask 130048
    %v107 = vsel %vm105, %v37, 0
    %v110 = vsel %vm105, %v38, 0
    %v113 = vsel %vm105, %v39, 0
    %v116 = vsel %vm105, %v40, 0
    %118 = vmatprep.subr.bf16.mxu0 0
    %119 = vmatpush1.bf16.msra.mxu0 0
    %120 = vmatprep.subr.bf16.mxu0 0
    %121 = vmatpush1.bf16.msra.mxu0 0
    %122 = vmatprep.subr.bf16.mxu0 0
    %123 = vmatpush1.bf16.msra.mxu0 0
    %124 = vmatprep.subr.bf16.mxu0 0
    %125 = vmatpush1.bf16.msra.mxu0 0
    %126 = vmatprep.subr.bf16.mxu0 0
    %127 = vmatpush1.bf16.msra.mxu0 0
    %128 = vmatprep.subr.bf16.mxu0 0
    %129 = vmatpush1.bf16.msra.mxu0 0
    %130 = vmatprep.subr.bf16.mxu0 0
    %131 = vmatpush1.bf16.msra.mxu0 0
    %132 = vmatprep.subr.bf16.mxu0 0
    %133 = vmatpush1.bf16.msra.mxu0 %v103
    %134 = vmatprep.subr.bf16.mxu0 0
    %135 = vmatpush2.bf16.msra.mxu0 0
    %136 = vmatprep.subr.bf16.mxu0 0
    %137 = vmatpush2.bf16.msra.mxu0 0
    %138 = vmatprep.subr.bf16.mxu0 0
    %139 = vmatpush2.bf16.msra.mxu0 0
    %140 = vmatprep.subr.bf16.mxu0 0
    %141 = vmatpush2.bf16.msra.mxu0 0
    %142 = vmatprep.subr.bf16.mxu0 0
    %143 = vmatpush2.bf16.msra.mxu0 0
    %144 = vmatprep.subr.bf16.mxu0 0
    %145 = vmatpush2.bf16.msra.mxu0 0
    %146 = vmatprep.subr.bf16.mxu0 0
    %147 = vmatpush2.bf16.msra.mxu0 0
    %148 = vmatprep.subr.bf16.mxu0 0
    %149 = vmatpush2.bf16.msra.mxu0 0
    %150 = vmatprep.mubr.bf16.mxu0 0
    %151 = vmatmul.mubr.bf16.gmra.mxu0 %v107
    %v152 = vpop.f32.mrf.mxu0
    %v153 = vadd.f32 %v98, %v152
    %v154 = vpop.f32.mrf.mxu0
    %v155 = vpop.f32.mrf.mxu0
    %v156 = vadd.f32 %v98, %v155
    %v157 = vpop.f32.mrf.mxu0
    %158 = vmatprep.mubr.bf16.mxu0 0
    %159 = vmatmul.mubr.bf16.gmra.mxu0 %v110
    %v160 = vpop.f32.mrf.mxu0
    %v161 = vadd.f32 %v98, %v160
    %v162 = vpop.f32.mrf.mxu0
    %v163 = vpop.f32.mrf.mxu0
    %v164 = vadd.f32 %v98, %v163
    %v165 = vpop.f32.mrf.mxu0
    %166 = vmatprep.mubr.bf16.mxu0 0
    %167 = vmatmul.mubr.bf16.gmra.mxu0 %v113
    %v168 = vpop.f32.mrf.mxu0
    %v169 = vadd.f32 %v98, %v168
    %v170 = vpop.f32.mrf.mxu0
    %v171 = vpop.f32.mrf.mxu0
    %v172 = vadd.f32 %v98, %v171
    %v173 = vpop.f32.mrf.mxu0
    %174 = vmatprep.mubr.bf16.mxu0 0
    %175 = vmatmul.mubr.bf16.gmra.mxu0 %v116
    %v176 = vpop.f32.mrf.mxu0
    %v177 = vadd.f32 %v98, %v176
    %v178 = vpop.f32.mrf.mxu0
    %v179 = vpop.f32.mrf.mxu0
    %v180 = vadd.f32 %v98, %v179
    %v181 = vpop.f32.mrf.mxu0
    %182 = vdwg.mxu0
    %v183 = vmul.f32 %v153, %v153
    %v184 = vmul.f32 %v156, %v156
    %v185 = vmul.f32 %v161, %v161
    %v186 = vmul.f32 %v164, %v164
    %v187 = vmul.f32 %v169, %v169
    %v188 = vmul.f32 %v172, %v172
    %v189 = vmul.f32 %v177, %v177
    %v190 = vmul.f32 %v180, %v180
    %v191 = vmul.f32 %v153, %v183
    %v192 = vmul.f32 %v156, %v184
    %v193 = vmul.f32 %v161, %v185
    %v194 = vmul.f32 %v164, %v186
    %v195 = vmul.f32 %v169, %v187
    %v196 = vmul.f32 %v172, %v188
    %v197 = vmul.f32 %v177, %v189
    %v198 = vmul.f32 %v180, %v190
    %v199 = vmul.f32 %v191, 0.044715
    %v200 = vmul.f32 %v192, 0.044715
    %v201 = vmul.f32 %v193, 0.044715
    %v202 = vmul.f32 %v194, 0.044715
    %v203 = vmul.f32 %v195, 0.044715
    %v204 = vmul.f32 %v196, 0.044715
    %v205 = vmul.f32 %v197, 0.044715
    %v206 = vmul.f32 %v198, 0.044715
    %v207 = vadd.f32 %v153, %v199
    %v208 = vadd.f32 %v156, %v200
    %v209 = vadd.f32 %v161, %v201
    %v210 = vadd.f32 %v164, %v202
    %v211 = vadd.f32 %v169, %v203
    %v212 = vadd.f32 %v172, %v204
    %v213 = vadd.f32 %v177, %v205
    %v214 = vadd.f32 %v180, %v206
    %v215 = vmul.f32 %v207, 0.7978846
    %v216 = vmul.f32 %v208, 0.7978846
    %v217 = vmul.f32 %v209, 0.7978846
    %v218 = vmul.f32 %v210, 0.7978846
    %v219 = vmul.f32 %v211, 0.7978846
    %v220 = vmul.f32 %v212, 0.7978846
    %v221 = vmul.f32 %v213, 0.7978846
    %v222 = vmul.f32 %v214, 0.7978846
    %v223 = vtanh.pop %v215
    %v224 = vtanh.pop %v216
    %v225 = vtanh.pop %v217
    %v226 = vtanh.pop %v218
    %v227 = vtanh.pop %v219
    %v228 = vtanh.pop %v220
    %v229 = vtanh.pop %v221
    %v230 = vtanh.pop %v222
    %v231 = vadd.f32 %v223, 1.0
    %v232 = vadd.f32 %v224, 1.0
    %v233 = vadd.f32 %v225, 1.0
    %v234 = vadd.f32 %v226, 1.0
    %v235 = vadd.f32 %v227, 1.0
    %v236 = vadd.f32 %v228, 1.0
    %v237 = vadd.f32 %v229, 1.0
    %v238 = vadd.f32 %v230, 1.0
    %v239 = vmul.f32 %v231, 0.5
    %v240 = vmul.f32 %v232, 0.5
    %v241 = vmul.f32 %v233, 0.5
    %v242 = vmul.f32 %v234, 0.5
    %v243 = vmul.f32 %v235, 0.5
    %v244 = vmul.f32 %v236, 0.5
    %v245 = vmul.f32 %v237, 0.5
    %v246 = vmul.f32 %v238, 0.5
    %v247 = vmul.f32 %v153, %v239
    %v248 = vmul.f32 %v156, %v240
    %v249 = vmul.f32 %v161, %v241
    %v250 = vmul.f32 %v164, %v242
    %v251 = vmul.f32 %v169, %v243
    %v252 = vmul.f32 %v172, %v244
    %v253 = vmul.f32 %v177, %v245
    %v254 = vmul.f32 %v180, %v246
    %v255 = vrot.slane %v247, 4
    %v256 = vadd.f32 %v247, %v255
    %v257 = vrot.slane %v256, 2
    %v258 = vadd.f32 %v256, %v257
    %v259 = vrot.slane %v258, 1
    %v260 = vadd.f32 %v258, %v259
    %v261 = vrot.slane %v248, 4
    %v262 = vadd.f32 %v248, %v261
    %v263 = vrot.slane %v262, 2
    %v264 = vadd.f32 %v262, %v263
    %v265 = vrot.slane %v264, 1
    %v266 = vadd.f32 %v264, %v265
    %v267 = vrot.slane %v249, 4
    %v268 = vadd.f32 %v249, %v267
    %v269 = vrot.slane %v268, 2
    %v270 = vadd.f32 %v268, %v269
    %v271 = vrot.slane %v270, 1
    %v272 = vadd.f32 %v270, %v271
    %v273 = vrot.slane %v250, 4
    %v274 = vadd.f32 %v250, %v273
    %v275 = vrot.slane %v274, 2
    %v276 = vadd.f32 %v274, %v275
    %v277 = vrot.slane %v276, 1
    %v278 = vadd.f32 %v276, %v277
    %v279 = vrot.slane %v251, 4
    %v280 = vadd.f32 %v251, %v279
    %v281 = vrot.slane %v280, 2
    %v282 = vadd.f32 %v280, %v281
    %v283 = vrot.slane %v282, 1
    %v284 = vadd.f32 %v282, %v283
    %v285 = vrot.slane %v252, 4
    %v286 = vadd.f32 %v252, %v285
    %v287 = vrot.slane %v286, 2
    %v288 = vadd.f32 %v286, %v287
    %v289 = vrot.slane %v288, 1
    %v290 = vadd.f32 %v288, %v289
    %v291 = vrot.slane %v253, 4
    %v292 = vadd.f32 %v253, %v291
    %v293 = vrot.slane %v292, 2
    %v294 = vadd.f32 %v292, %v293
    %v295 = vrot.slane %v294, 1
    %v296 = vadd.f32 %v294, %v295
    %v297 = vrot.slane %v254, 4
    %v298 = vadd.f32 %v254, %v297
    %v299 = vrot.slane %v298, 2
    %v300 = vadd.f32 %v298, %v299
    %v301 = vrot.slane %v300, 1
    %v302 = vadd.f32 %v300, %v301
    %v303 = vpack.c.bf16 %v260, %v260
    %v304 = vpack.c.bf16 %v266, %v266
    %v305 = vpack.c.bf16 %v272, %v272
    %v306 = vpack.c.bf16 %v278, %v278
    %v307 = vpack.c.bf16 %v284, %v284
    %v308 = vpack.c.bf16 %v290, %v290
    %v309 = vpack.c.bf16 %v296, %v296
    %v310 = vpack.c.bf16 %v302, %v302
    %v311 = vlaneseq
    %v312 = vshrl.u32 %v311, 7
    %v313 = vsub.s32 1, %v312
    %v314 = vrot.slane %v92, %v313
    %v323 = vunpack.c.l.b16 %v303
    %v324 = vunpack.c.l.b16 %v304
    %v325 = vunpack.c.l.b16 %v305
    %v326 = vunpack.c.l.b16 %v306
    %v327 = vunpack.c.l.b16 %v307
    %v328 = vunpack.c.l.b16 %v308
    %v329 = vunpack.c.l.b16 %v309
    %v330 = vunpack.c.l.b16 %v310
    %vm331 = vcmask 1041409
    %v332 = vsel %vm331, %v324, %v323
    %vm333 = vcmask 1042434
    %v334 = vsel %vm333, %v325, %v332
    %vm335 = vcmask 1043459
    %v336 = vsel %vm335, %v326, %v334
    %vm337 = vcmask 1044484
    %v338 = vsel %vm337, %v327, %v336
    %vm339 = vcmask 1045509
    %v340 = vsel %vm339, %v328, %v338
    %vm341 = vcmask 1046534
    %v342 = vsel %vm341, %v329, %v340
    %vm343 = vcmask 1047559
    %v344 = vsel %vm343, %v330, %v342
    %v345 = vpack.c.b16 %v344, %v344
    %v363 = vunpack.c.l.b16 %v43
    %v364 = vunpack.c.l.b16 %v44
    %v365 = vunpack.c.l.b16 %v45
    %v366 = vunpack.c.l.b16 %v46
    %v367 = vunpack.c.l.b16 %v47
    %v368 = vunpack.c.l.b16 %v48
    %v369 = vunpack.c.l.b16 %v49
    %v370 = vunpack.c.l.b16 %v50
    %v371 = vunpack.c.l.b16 %v51
    %v372 = vunpack.c.l.b16 %v52
    %v373 = vunpack.c.l.b16 %v53
    %v374 = vunpack.c.l.b16 %v54
    %v375 = vunpack.c.l.b16 %v55
    %v376 = vunpack.c.l.b16 %v56
    %v377 = vunpack.c.l.b16 %v57
    %v378 = vunpack.c.l.b16 %v58
    %v379 = vpack.c.b16 %v364, %v363
    %v380 = vpack.c.b16 %v366, %v365
    %v381 = vpack.c.b16 %v368, %v367
    %v382 = vpack.c.b16 %v370, %v369
    %v383 = vpack.c.b16 %v372, %v371
    %v384 = vpack.c.b16 %v374, %v373
    %v385 = vpack.c.b16 %v376, %v375
    %v386 = vpack.c.b16 %v378, %v377
    %395 = vmatprep.subr.bf16.mxu0 0
    %396 = vmatpush1.bf16.msra.mxu0 %v386
    %397 = vmatprep.subr.bf16.mxu0 0
    %398 = vmatpush1.bf16.msra.mxu0 %v385
    %399 = vmatprep.subr.bf16.mxu0 0
    %400 = vmatpush1.bf16.msra.mxu0 %v384
    %401 = vmatprep.subr.bf16.mxu0 0
    %402 = vmatpush1.bf16.msra.mxu0 %v383
    %403 = vmatprep.subr.bf16.mxu0 0
    %404 = vmatpush1.bf16.msra.mxu0 %v382
    %405 = vmatprep.subr.bf16.mxu0 0
    %406 = vmatpush1.bf16.msra.mxu0 %v381
    %407 = vmatprep.subr.bf16.mxu0 0
    %408 = vmatpush1.bf16.msra.mxu0 %v380
    %409 = vmatprep.subr.bf16.mxu0 0
    %410 = vmatpush1.bf16.msra.mxu0 %v379
    %411 = vmatprep.subr.bf16.mxu0 0
    %412 = vmatpush2.bf16.msra.mxu0 0
    %413 = vmatprep.subr.bf16.mxu0 0
    %414 = vmatpush2.bf16.msra.mxu0 0
    %415 = vmatprep.subr.bf16.mxu0 0
    %416 = vmatpush2.bf16.msra.mxu0 0
    %417 = vmatprep.subr.bf16.mxu0 0
    %418 = vmatpush2.bf16.msra.mxu0 0
    %419 = vmatprep.subr.bf16.mxu0 0
    %420 = vmatpush2.bf16.msra.mxu0 0
    %421 = vmatprep.subr.bf16.mxu0 0
    %422 = vmatpush2.bf16.msra.mxu0 0
    %423 = vmatprep.subr.bf16.mxu0 0
    %424 = vmatpush2.bf16.msra.mxu0 0
    %425 = vmatprep.subr.bf16.mxu0 0
    %426 = vmatpush2.bf16.msra.mxu0 0
    %427 = vmatprep.mubr.bf16.mxu0 0
    %428 = vmatmul.mubr.bf16.gmra.mxu0 %v345
    %v429 = vpop.f32.mrf.mxu0
    %v430 = vadd.f32 %v314, %v429
    %v431 = vpop.f32.mrf.mxu0
    %v432 = vpop.f32.mrf.mxu0
    %v433 = vpop.f32.mrf.mxu0
    %434 = vdwg.mxu0
    %v435 = vmul.f32 %v430, %v430
    %v436 = vmul.f32 %v430, %v435
    %v437 = vmul.f32 %v436, 0.044715
    %v438 = vadd.f32 %v430, %v437
    %v439 = vmul.f32 %v438, 0.7978846
    %v440 = vtanh.pop %v439
    %v441 = vadd.f32 %v440, 1.0
    %v442 = vmul.f32 %v441, 0.5
    %v443 = vmul.f32 %v430, %v442
    %v444 = vpack.c.bf16 %v443, %v443
    %v445 = vlaneseq
    %v446 = vshrl.u32 %v445, 7
    %v447 = vsub.s32 2, %v446
    %v448 = vrot.slane %v94, %v447
    %v465 = vunpack.c.l.b16 %v59
    %v466 = vunpack.c.l.b16 %v60
    %v467 = vunpack.c.l.b16 %v61
    %v468 = vunpack.c.l.b16 %v62
    %v469 = vunpack.c.l.b16 %v63
    %v470 = vunpack.c.l.b16 %v64
    %v471 = vunpack.c.l.b16 %v65
    %v472 = vunpack.c.l.b16 %v66
    %v473 = vunpack.c.l.b16 %v67
    %v474 = vunpack.c.l.b16 %v68
    %v475 = vunpack.c.l.b16 %v69
    %v476 = vunpack.c.l.b16 %v70
    %v477 = vunpack.c.l.b16 %v71
    %v478 = vunpack.c.l.b16 %v72
    %v479 = vunpack.c.l.b16 %v73
    %v480 = vunpack.c.l.b16 %v74
    %v481 = vpack.c.b16 %v466, %v465
    %v482 = vpack.c.b16 %v468, %v467
    %v483 = vpack.c.b16 %v470, %v469
    %v484 = vpack.c.b16 %v472, %v471
    %v485 = vpack.c.b16 %v474, %v473
    %v486 = vpack.c.b16 %v476, %v475
    %v487 = vpack.c.b16 %v478, %v477
    %v488 = vpack.c.b16 %v480, %v479
    %497 = vmatprep.subr.bf16.mxu0 0
    %498 = vmatpush1.bf16.msra.mxu0 %v488
    %499 = vmatprep.subr.bf16.mxu0 0
    %500 = vmatpush1.bf16.msra.mxu0 %v487
    %501 = vmatprep.subr.bf16.mxu0 0
    %502 = vmatpush1.bf16.msra.mxu0 %v486
    %503 = vmatprep.subr.bf16.mxu0 0
    %504 = vmatpush1.bf16.msra.mxu0 %v485
    %505 = vmatprep.subr.bf16.mxu0 0
    %506 = vmatpush1.bf16.msra.mxu0 %v484
    %507 = vmatprep.subr.bf16.mxu0 0
    %508 = vmatpush1.bf16.msra.mxu0 %v483
    %509 = vmatprep.subr.bf16.mxu0 0
    %510 = vmatpush1.bf16.msra.mxu0 %v482
    %511 = vmatprep.subr.bf16.mxu0 0
    %512 = vmatpush1.bf16.msra.mxu0 %v481
    %513 = vmatprep.subr.bf16.mxu0 0
    %514 = vmatpush2.bf16.msra.mxu0 0
    %515 = vmatprep.subr.bf16.mxu0 0
    %516 = vmatpush2.bf16.msra.mxu0 0
    %517 = vmatprep.subr.bf16.mxu0 0
    %518 = vmatpush2.bf16.msra.mxu0 0
    %519 = vmatprep.subr.bf16.mxu0 0
    %520 = vmatpush2.bf16.msra.mxu0 0
    %521 = vmatprep.subr.bf16.mxu0 0
    %522 = vmatpush2.bf16.msra.mxu0 0
    %523 = vmatprep.subr.bf16.mxu0 0
    %524 = vmatpush2.bf16.msra.mxu0 0
    %525 = vmatprep.subr.bf16.mxu0 0
    %526 = vmatpush2.bf16.msra.mxu0 0
    %527 = vmatprep.subr.bf16.mxu0 0
    %528 = vmatpush2.bf16.msra.mxu0 0
    %529 = vmatprep.mubr.bf16.mxu0 0
    %530 = vmatmul.mubr.bf16.gmra.mxu0 %v444
    %v531 = vpop.f32.mrf.mxu0
    %v532 = vadd.f32 %v448, %v531
    %v533 = vpop.f32.mrf.mxu0
    %v534 = vpop.f32.mrf.mxu0
    %v535 = vpop.f32.mrf.mxu0
    %536 = vdwg.mxu0
    %v537 = vmul.f32 %v532, %v532
    %v538 = vmul.f32 %v532, %v537
    %v539 = vmul.f32 %v538, 0.044715
    %v540 = vadd.f32 %v532, %v539
    %v541 = vmul.f32 %v540, 0.7978846
    %v542 = vtanh.pop %v541
    %v543 = vadd.f32 %v542, 1.0
    %v544 = vmul.f32 %v543, 0.5
    %v545 = vmul.f32 %v532, %v544
    %v546 = vpack.c.bf16 %v545, %v545
    %v547 = vlaneseq
    %v548 = vshrl.u32 %v547, 7
    %v549 = vsub.s32 3, %v548
    %v550 = vrot.slane %v94, %v549
    %v567 = vunpack.c.l.b16 %v75
    %v568 = vunpack.c.l.b16 %v76
    %v569 = vunpack.c.l.b16 %v77
    %v570 = vunpack.c.l.b16 %v78
    %v571 = vunpack.c.l.b16 %v79
    %v572 = vunpack.c.l.b16 %v80
    %v573 = vunpack.c.l.b16 %v81
    %v574 = vunpack.c.l.b16 %v82
    %v575 = vunpack.c.l.b16 %v83
    %v576 = vunpack.c.l.b16 %v84
    %v577 = vunpack.c.l.b16 %v85
    %v578 = vunpack.c.l.b16 %v86
    %v579 = vunpack.c.l.b16 %v87
    %v580 = vunpack.c.l.b16 %v88
    %v581 = vunpack.c.l.b16 %v89
    %v582 = vunpack.c.l.b16 %v90
    %v583 = vpack.c.b16 %v568, %v567
    %v584 = vpack.c.b16 %v570, %v569
    %v585 = vpack.c.b16 %v572, %v571
    %v586 = vpack.c.b16 %v574, %v573
    %v587 = vpack.c.b16 %v576, %v575
    %v588 = vpack.c.b16 %v578, %v577
    %v589 = vpack.c.b16 %v580, %v579
    %v590 = vpack.c.b16 %v582, %v581
    %599 = vmatprep.subr.bf16.mxu0 0
    %600 = vmatpush1.bf16.msra.mxu0 %v590
    %601 = vmatprep.subr.bf16.mxu0 0
    %602 = vmatpush1.bf16.msra.mxu0 %v589
    %603 = vmatprep.subr.bf16.mxu0 0
    %604 = vmatpush1.bf16.msra.mxu0 %v588
    %605 = vmatprep.subr.bf16.mxu0 0
    %606 = vmatpush1.bf16.msra.mxu0 %v587
    %607 = vmatprep.subr.bf16.mxu0 0
    %608 = vmatpush1.bf16.msra.mxu0 %v586
    %609 = vmatprep.subr.bf16.mxu0 0
    %610 = vmatpush1.bf16.msra.mxu0 %v585
    %611 = vmatprep.subr.bf16.mxu0 0
    %612 = vmatpush1.bf16.msra.mxu0 %v584
    %613 = vmatprep.subr.bf16.mxu0 0
    %614 = vmatpush1.bf16.msra.mxu0 %v583
    %615 = vmatprep.subr.bf16.mxu0 0
    %616 = vmatpush2.bf16.msra.mxu0 0
    %617 = vmatprep.subr.bf16.mxu0 0
    %618 = vmatpush2.bf16.msra.mxu0 0
    %619 = vmatprep.subr.bf16.mxu0 0
    %620 = vmatpush2.bf16.msra.mxu0 0
    %621 = vmatprep.subr.bf16.mxu0 0
    %622 = vmatpush2.bf16.msra.mxu0 0
    %623 = vmatprep.subr.bf16.mxu0 0
    %624 = vmatpush2.bf16.msra.mxu0 0
    %625 = vmatprep.subr.bf16.mxu0 0
    %626 = vmatpush2.bf16.msra.mxu0 0
    %627 = vmatprep.subr.bf16.mxu0 0
    %628 = vmatpush2.bf16.msra.mxu0 0
    %629 = vmatprep.subr.bf16.mxu0 0
    %630 = vmatpush2.bf16.msra.mxu0 0
    %631 = vmatprep.mubr.bf16.mxu0 0
    %632 = vmatmul.mubr.bf16.gmra.mxu0 %v546
    %v633 = vpop.f32.mrf.mxu0
    %v634 = vadd.f32 %v550, %v633
    %v635 = vpop.f32.mrf.mxu0
    %v636 = vpop.f32.mrf.mxu0
    %v637 = vpop.f32.mrf.mxu0
    %638 = vdwg.mxu0
    %639 = vst [vmem:[%s3] sm:$0xff] %v634
    // Predicated region
    $region18: #{token_actor_critic_forward.1} parent=1 // pred_check
      _
    $region19: #{token_actor_critic_forward.1} parent=1 // pred_check_branch
      %641 = sbr.rel (0) target = $region21
    $region20: #{token_actor_critic_forward.1} parent=1 // pred_region
      _
    $region21: #{token_actor_critic_forward.1} parent=1 // pred_fallthru
      _
    // Predicated region
    $region22: #{token_actor_critic_forward.1} parent=1 // pred_check
      _
    $region23: #{token_actor_critic_forward.1} parent=1 // pred_check_branch
      %643 = sbr.rel (0) target = $region25
    $region24: #{token_actor_critic_forward.1} parent=1 // pred_region
      _
    $region25: #{token_actor_critic_forward.1} parent=1 // pred_fallthru
      _
    %644 = vsyncpa [#allocation3], 1

</llo_original>
